<compile_context>
chip_gen: v6e
topology: v6e:2x2x1
jax: 0.10.0
libtpu: 0.0.40
codegen_flags: <defaults>
</compile_context>

<pallas_src>
import numpy as np
import jax
import jax.numpy as jnp
from jax.experimental import pallas as pl
from jax.experimental.pallas import tpu as pltpu


def _blur_matrix(n: int, stride: int) -> np.ndarray:
    """(n_out, n) matrix = reflect-pad(1) + 1-D conv([1,2,1]/4) with stride."""
    assert n >= 2, "reflect padding of 1 needs spatial size >= 2"
    k = np.array([1.0, 2.0, 1.0], dtype=np.float64) / 4.0
    n_pad = n + 2
    n_out = (n - 1) // stride + 1
    a_pad = np.zeros((n_out, n_pad), dtype=np.float64)
    for o in range(n_out):
        for t in range(3):
            a_pad[o, stride * o + t] += k[t]
    refl = np.zeros((n_pad, n), dtype=np.float64)   # x_pad = refl @ x
    refl[0, 1] = 1.0
    for i in range(1, n + 1):
        refl[i, i - 1] = 1.0
    refl[n + 1, n - 2] = 1.0
    return (a_pad @ refl).astype(np.float32)


def _round_up(a: int, b: int) -> int:
    return -(-a // b) * b


def _vmem_budget():
    """(working-set budget, vmem_limit_bytes), generation-aware & conservative."""
    try:
        cap = int(pltpu.get_tpu_info().vmem_capacity_bytes)
    except Exception:
        cap = 64 * 1024 * 1024                 # v7x per-TC worst case
    vmem_limit = min(cap // 2, 48 * 1024 * 1024)   # 48 MiB on v5e/v6e, 32 MiB on v7x
    budget = (vmem_limit * 3) // 4                 # leave compiler-scratch headroom
    return budget, vmem_limit


def _pick_row_block(n_slices, hw, hw_out, x_bytes, w_bytes, budget):
    """Pick the (n,c)-rows-per-block cb (multiple of 8) that fits the budget."""
    def working_set(cb):
        # double-buffered x / out blocks + double-buffered (constant) weight
        # + the in-kernel f32 matmul result before the dtype cast.
        return (2 * cb * hw * x_bytes + 2 * cb * hw_out * x_bytes
                + 2 * w_bytes + cb * hw_out * 4)

    cb = 8
    while cb + 8 <= 4096 and working_set(cb + 8) <= budget:
        cb += 8

    if cb >= n_slices:
        if n_slices >= 16:
            # The whole problem fits in one block; split anyway so the flat
            # "parallel" grid axis has >= 2 blocks (keeps both TCs busy on v7x).
            cb = _round_up(-(-n_slices // 2), 8)
        else:
            cb = n_slices                      # single full-extent block (legal)
    return cb


def _blurpool_kernel(x_ref, w_ref, o_ref):
    # x_ref : (cb, H*W)   w_ref : (H*W, Ho*Wo)   o_ref : (cb, Ho*Wo)
    o_ref[...] = jnp.dot(x_ref[...], w_ref[...],
                         preferred_element_type=jnp.float32).astype(o_ref.dtype)


def downsample(x, filt_size: int = 3, stride: int = 2):
    """Forward pass of the PyTorch `Downsample` module (anti-aliased blur-pool)."""
    assert filt_size == 3, "module only supports filt_size == 3"
    N, C, H, W = x.shape
    H_out = (H - 1) // stride + 1
    W_out = (W - 1) // stride + 1
    hw, hw_out = H * W, H_out * W_out

    # Separable blur folded into one fused matrix:
    #   out[n,c] = A @ x[n,c] @ B.T   <=>   vec(out) = vec(x) @ kron(A, B).T
    A = _blur_matrix(H, stride)                       # (H_out, H)
    B = _blur_matrix(W, stride)                       # (W_out, W)
    M = np.ascontiguousarray(np.kron(A, B).T)         # (H*W, Ho*Wo)
    # NOTE: for very large H*W the fused kron weight grows as (H*W)^2/4; a
    # separable two-matmul formulation would be preferable in that regime.

    w_dtype = x.dtype if x.dtype in (jnp.bfloat16, jnp.float32) else jnp.float32
    w = jnp.asarray(M, dtype=w_dtype)                 # weights exact in bf16 too
    x_bytes = jnp.dtype(x.dtype).itemsize
    w_bytes = M.shape[0] * M.shape[1] * jnp.dtype(w_dtype).itemsize

    n_slices = N * C
    budget, vmem_limit = _vmem_budget()
    cb = _pick_row_block(n_slices, hw, hw_out, x_bytes, w_bytes, budget)

    padded = _round_up(n_slices, cb)
    num_blocks = padded // cb

    x2 = x.reshape(n_slices, hw)                      # free row-major view
    if padded != n_slices:
        x2 = jnp.pad(x2, ((0, padded - n_slices), (0, 0)))

    flops = 2 * padded * hw * hw_out
    bytes_accessed = padded * (hw + hw_out) * x_bytes + w_bytes

    out2 = pl.pallas_call(
        _blurpool_kernel,
        out_shape=jax.ShapeDtypeStruct((padded, hw_out), x.dtype),
        grid=(num_blocks,),
        in_specs=[
            pl.BlockSpec((cb, hw), lambda i: (i, 0)),
            pl.BlockSpec((hw, hw_out), lambda i: (0, 0)),
        ],
        out_specs=pl.BlockSpec((cb, hw_out), lambda i: (i, 0)),
        compiler_params=pltpu.CompilerParams(
            dimension_semantics=("parallel",),
            vmem_limit_bytes=int(vmem_limit)),
        cost_estimate=pl.CostEstimate(
            flops=int(flops), transcendentals=0,
            bytes_accessed=int(bytes_accessed)),
    )(x2, w)

    if padded != n_slices:
        out2 = out2[:n_slices]
    return out2.reshape(N, C, H_out, W_out)


def _reference_downsample(x, stride=2):
    """Pure-JAX reference mirroring the PyTorch reflect-pad + depthwise conv."""
    N, C, H, W = x.shape
    a = jnp.array([1.0, 2.0, 1.0], dtype=jnp.float32)
    filt = a[:, None] * a[None, :]
    filt = filt / jnp.sum(filt)
    xp = jnp.pad(x.astype(jnp.float32), ((0, 0), (0, 0), (1, 1), (1, 1)),
                 mode="reflect")
    H_out = (H - 1) // stride + 1
    W_out = (W - 1) // stride + 1
    out = jnp.zeros((N, C, H_out, W_out), dtype=jnp.float32)
    for di in range(3):
        for dj in range(3):
            patch = xp[:, :,
                       di:di + stride * (H_out - 1) + 1:stride,
                       dj:dj + stride * (W_out - 1) + 1:stride]
            out = out + filt[di, dj] * patch
    return out.astype(x.dtype)


if __name__ == "__main__":
    key = jax.random.PRNGKey(0)
    N, C, H, W = 2, 4, 16, 16
    x = jax.random.normal(key, (N, C, H, W), dtype=jnp.float32)

    out = jax.block_until_ready(downsample(x))
    ref = _reference_downsample(x)

    assert out.shape == ref.shape == (N, C, 8, 8), out.shape
    assert out.dtype == x.dtype
    assert jnp.allclose(out, ref, atol=1e-5, rtol=1e-5), float(
        jnp.max(jnp.abs(out - ref)))

    print("KERNEL_OK")
</pallas_src>

<mosaic_0001>
module attributes {stable_mosaic.version = 11 : i64} {
  func.func @_blurpool_kernel(%arg0: i32, %arg1: memref<8x256xf32, #tpu.memory_space<vmem>>, %arg2: memref<256x64xf32, #tpu.memory_space<vmem>>, %arg3: memref<8x64xf32, #tpu.memory_space<vmem>>) attributes {dimension_semantics = [#tpu.dimension_semantics<parallel>], iteration_bounds = array<i64: 1>, scalar_prefetch = 0 : i64, scratch_operands = 0 : i64, tpu.core_type = #tpu.core_type<tc>, window_params = [{transform_indices = @transform_0, window_bounds = array<i64: 8, 256>}, {pipeline_mode = #tpu.pipeline_mode<synchronous>, transform_indices = @transform_1, window_bounds = array<i64: 256, 64>}, {transform_indices = @transform_2, window_bounds = array<i64: 8, 64>}]} {
    %c0 = arith.constant 0 : index
    %c0_0 = arith.constant 0 : index
    %0 = vector.load %arg1[%c0, %c0_0] : memref<8x256xf32, #tpu.memory_space<vmem>>, vector<8x256xf32>
    %c0_1 = arith.constant 0 : index
    %c0_2 = arith.constant 0 : index
    %1 = vector.load %arg2[%c0_1, %c0_2] : memref<256x64xf32, #tpu.memory_space<vmem>>, vector<256x64xf32>
    %cst = arith.constant dense<0.000000e+00> : vector<8x64xf32>
    %2 = tpu.matmul %0, %1, %cst {dimension_numbers = #tpu.dot_dimension_numbers<[1], [0], [0], [1], [0, 0, 1, 1], [], []>} : vector<8x256xf32>, vector<256x64xf32>, vector<8x64xf32> -> vector<8x64xf32>
    %c0_3 = arith.constant 0 : index
    %c0_4 = arith.constant 0 : index
    %3 = vector.load %arg3[%c0_3, %c0_4] : memref<8x64xf32, #tpu.memory_space<vmem>>, vector<8x64xf32>
    tpu.vector_store %arg3[%c0_3, %c0_4], %2 {strides = array<i32>} : memref<8x64xf32, #tpu.memory_space<vmem>>, vector<8x64xf32>,
    return
  }
  func.func @transform_0(%arg0: i32) -> (i32, i32) {
    %c0_i32 = arith.constant 0 : i32
    %c0_i32_0 = arith.constant 0 : i32
    return %arg0, %c0_i32 : i32, i32
  }
  func.func @transform_1(%arg0: i32) -> (i32, i32) {
    %c0_i32 = arith.constant 0 : i32
    %c0_i32_0 = arith.constant 0 : i32
    %c0_i32_1 = arith.constant 0 : i32
    return %c0_i32, %c0_i32_0 : i32, i32
  }
  func.func @transform_2(%arg0: i32) -> (i32, i32) {
    %c0_i32 = arith.constant 0 : i32
    %c0_i32_0 = arith.constant 0 : i32
    return %arg0, %c0_i32 : i32, i32
  }
}

</mosaic_0001>

<llo_original>
// kernel: tpu_custom_call.1
$region0: #{tpu_custom_call.1}
  #allocation0 [shape = 'u32[]', space=smem, size = 0x4, offset = 0x4, fixed_abs, tag = 'smem constant byte address 0x4 - core index']
  #allocation1 [shape = 'u32[144,128]{1,0:T(1,128)}', space=vmem, size = 0x12000, scoped, tag = 'internal scratch']
  %s0 = inlined_call_operand.vmem [shape: f32[8,256], index: 0, kind: input, shape index: {}]
  %s1 = inlined_call_operand.vmem [shape: f32[256,64], index: 1, kind: input, shape index: {}]
  %s2 = inlined_call_operand.hbm [shape: f32[8,64], index: 2, kind: output, shape index: {}]
  %s3 = sld [smem:[#allocation0]]
  $region18: #{tpu_custom_call.1} parent=0
    _
  %s5 = ssub.s32 1, %s3
  %s6 = scalar_select 0, %s5, %s3
  $region1: #{tpu_custom_call.1} parent=0
    #allocation2 [shape = 'u8[4096]{0}', space=vmem, size = 0x1000, scoped, tag = 'output window, operand 0, single buffered']
    #allocation3 [shape = 's32[1]{0}', space=sflag, size = 0x4, scoped, tag = 'scoped memory for tpu_custom_call.1']
    %7 = vsyncpa [#allocation3], 0
    // Predicated region
    $region2: #{tpu_custom_call.1} parent=1 // pred_check
      _
    $region3: #{tpu_custom_call.1} parent=1 // pred_check_branch
      %9 = sbr.rel (0) target = $region5
    $region4: #{tpu_custom_call.1} parent=1 // pred_region
      _
    $region5: #{tpu_custom_call.1} parent=1 // pred_fallthru
      _
    // Predicated region
    $region6: #{tpu_custom_call.1} parent=1 // pred_check
      _
    $region7: #{tpu_custom_call.1} parent=1 // pred_check_branch
      %11 = sbr.rel (0) target = $region9
    $region8: #{tpu_custom_call.1} parent=1 // pred_region
      _
    $region9: #{tpu_custom_call.1} parent=1 // pred_fallthru
      _
    %v12 = vld [vmem:[%s0] sm:$0xff]
    %v13 = vld [vmem:[%s0 + $0x8] sm:$0xff]
    %v14 = vld [vmem:[%s1] sm:$0xff]
    %v15 = vld [vmem:[%s1 + $0x8] sm:$0xff]
    %v16 = vld [vmem:[%s1 + $0x10] sm:$0xff]
    %v17 = vld [vmem:[%s1 + $0x18] sm:$0xff]
    %v18 = vld [vmem:[%s1 + $0x20] sm:$0xff]
    %v19 = vld [vmem:[%s1 + $0x28] sm:$0xff]
    %v20 = vld [vmem:[%s1 + $0x30] sm:$0xff]
    %v21 = vld [vmem:[%s1 + $0x38] sm:$0xff]
    %v22 = vld [vmem:[%s1 + $0x40] sm:$0xff]
    %v23 = vld [vmem:[%s1 + $0x48] sm:$0xff]
    %v24 = vld [vmem:[%s1 + $0x50] sm:$0xff]
    %v25 = vld [vmem:[%s1 + $0x58] sm:$0xff]
    %v26 = vld [vmem:[%s1 + $0x60] sm:$0xff]
    %v27 = vld [vmem:[%s1 + $0x68] sm:$0xff]
    %v28 = vld [vmem:[%s1 + $0x70] sm:$0xff]
    %v29 = vld [vmem:[%s1 + $0x78] sm:$0xff]
    %v30 = vld [vmem:[%s1 + $0x80] sm:$0xff]
    %v31 = vld [vmem:[%s1 + $0x88] sm:$0xff]
    %v32 = vld [vmem:[%s1 + $0x90] sm:$0xff]
    %v33 = vld [vmem:[%s1 + $0x98] sm:$0xff]
    %v34 = vld [vmem:[%s1 + $0xa0] sm:$0xff]
    %v35 = vld [vmem:[%s1 + $0xa8] sm:$0xff]
    %v36 = vld [vmem:[%s1 + $0xb0] sm:$0xff]
    %v37 = vld [vmem:[%s1 + $0xb8] sm:$0xff]
    %v38 = vld [vmem:[%s1 + $0xc0] sm:$0xff]
    %v39 = vld [vmem:[%s1 + $0xc8] sm:$0xff]
    %v40 = vld [vmem:[%s1 + $0xd0] sm:$0xff]
    %v41 = vld [vmem:[%s1 + $0xd8] sm:$0xff]
    %v42 = vld [vmem:[%s1 + $0xe0] sm:$0xff]
    %v43 = vld [vmem:[%s1 + $0xe8] sm:$0xff]
    %v44 = vld [vmem:[%s1 + $0xf0] sm:$0xff]
    %v45 = vld [vmem:[%s1 + $0xf8] sm:$0xff]
    %46 = vmatprep.subr.mxu0 0.0
    %47 = vmatpush1.msra.mxu0 %v29
    %48 = vmatprep.subr.mxu0 0.0
    %49 = vmatpush1.msra.mxu0 %v28
    %50 = vmatprep.subr.mxu0 0.0
    %51 = vmatpush1.msra.mxu0 %v27
    %52 = vmatprep.subr.mxu0 0.0
    %53 = vmatpush1.msra.mxu0 %v26
    %54 = vmatprep.subr.mxu0 0.0
    %55 = vmatpush1.msra.mxu0 %v25
    %56 = vmatprep.subr.mxu0 0.0
    %57 = vmatpush1.msra.mxu0 %v24
    %58 = vmatprep.subr.mxu0 0.0
    %59 = vmatpush1.msra.mxu0 %v23
    %60 = vmatprep.subr.mxu0 0.0
    %61 = vmatpush1.msra.mxu0 %v22
    %62 = vmatprep.subr.mxu0 0.0
    %63 = vmatpush1.msra.mxu0 %v21
    %64 = vmatprep.subr.mxu0 0.0
    %65 = vmatpush1.msra.mxu0 %v20
    %66 = vmatprep.subr.mxu0 0.0
    %67 = vmatpush1.msra.mxu0 %v19
    %68 = vmatprep.subr.mxu0 0.0
    %69 = vmatpush1.msra.mxu0 %v18
    %70 = vmatprep.subr.mxu0 0.0
    %71 = vmatpush1.msra.mxu0 %v17
    %72 = vmatprep.subr.mxu0 0.0
    %73 = vmatpush1.msra.mxu0 %v16
    %74 = vmatprep.subr.mxu0 0.0
    %75 = vmatpush1.msra.mxu0 %v15
    %76 = vmatprep.subr.mxu0 0.0
    %77 = vmatpush1.msra.mxu0 %v14
    %78 = vmatprep.subr.mxu0 0.0
    %79 = vmatpush2.msra.mxu0 %v45
    %80 = vmatprep.subr.mxu0 0.0
    %81 = vmatpush2.msra.mxu0 %v44
    %82 = vmatprep.subr.mxu0 0.0
    %83 = vmatpush2.msra.mxu0 %v43
    %84 = vmatprep.subr.mxu0 0.0
    %85 = vmatpush2.msra.mxu0 %v42
    %86 = vmatprep.subr.mxu0 0.0
    %87 = vmatpush2.msra.mxu0 %v41
    %88 = vmatprep.subr.mxu0 0.0
    %89 = vmatpush2.msra.mxu0 %v40
    %90 = vmatprep.subr.mxu0 0.0
    %91 = vmatpush2.msra.mxu0 %v39
    %92 = vmatprep.subr.mxu0 0.0
    %93 = vmatpush2.msra.mxu0 %v38
    %94 = vmatprep.subr.mxu0 0.0
    %95 = vmatpush2.msra.mxu0 %v37
    %96 = vmatprep.subr.mxu0 0.0
    %97 = vmatpush2.msra.mxu0 %v36
    %98 = vmatprep.subr.mxu0 0.0
    %99 = vmatpush2.msra.mxu0 %v35
    %100 = vmatprep.subr.mxu0 0.0
    %101 = vmatpush2.msra.mxu0 %v34
    %102 = vmatprep.subr.mxu0 0.0
    %103 = vmatpush2.msra.mxu0 %v33
    %104 = vmatprep.subr.mxu0 0.0
    %105 = vmatpush2.msra.mxu0 %v32
    %106 = vmatprep.subr.mxu0 0.0
    %107 = vmatpush2.msra.mxu0 %v31
    %108 = vmatprep.subr.mxu0 0.0
    %109 = vmatpush2.msra.mxu0 %v30
    %110 = vmatprep.mubr.f32.mxu0 %v13
    %111 = vmatmul.mubr.f32.gmra.mxu0 %v12
    %v112 = vpop.f32.mrf.mxu0
    %v113 = vadd.f32 0.0, %v112
    %v114 = vpop.f32.mrf.mxu0
    %115 = vdwg.mxu0
    %vm116 = vcmask 523264
    %117 = vst.msk [vmem:[#allocation2] sm:$0xff] %vm116, %v113
    // Predicated region
    $region10: #{tpu_custom_call.1} parent=1 // pred_check
      _
    $region11: #{tpu_custom_call.1} parent=1 // pred_check_branch
      %119 = sbr.rel (0) target = $region13
    $region12: #{tpu_custom_call.1} parent=1 // pred_region
      %s121 = ssub.s32 128, 128
      %122 = vsyncadd [#allocation3], %s121
      %s124 = sshll.u32 [#allocation2], 4
      %s125 = int_to_ptr.vmem [resolvable:$true] %s124
      %127 = dma.vmem_to_hbm [thread:$0]  %s125, 128, %s2, [#allocation3]
    $region13: #{tpu_custom_call.1} parent=1 // pred_fallthru
      _
    // Predicated region
    $region14: #{tpu_custom_call.1} parent=1 // pred_check
      _
    $region15: #{tpu_custom_call.1} parent=1 // pred_check_branch
      %129 = sbr.rel (0) target = $region17
    $region16: #{tpu_custom_call.1} parent=1 // pred_region
      %130 = dma.done [#allocation3], 128
    $region17: #{tpu_custom_call.1} parent=1 // pred_fallthru
      _
    %131 = vsyncpa [#allocation3], 1

</llo_original>
